<compile_context>
chip_gen: v6e
topology: v6e:2x2x1
jax: 0.10.0
libtpu: 0.0.40
codegen_flags: <defaults>
</compile_context>

<pallas_src>
import jax
import jax.numpy as jnp
from jax.experimental import pallas as pl
from jax.experimental.pallas import tpu as pltpu


def _multitask_kernel(u_ref, q_ref, a_ref, b_ref,
                      w1u_ref, w1q_ref, w1e_ref, b1_ref,
                      w2_ref, b2_ref, out_ref):
    u = u_ref[...]                                  # (D, TB) bf16, batch on lanes
    q = q_ref[...]                                  # (D, TB) bf16

    # f32 elementwise product for the matrix-factorization path (accuracy),
    # bf16 copy of it for the MXU dot.
    elem_f32 = u.astype(jnp.float32) * q.astype(jnp.float32)   # (D, TB)
    elem = elem_f32.astype(jnp.bfloat16)

    # MF prediction: sum_d(u*q) + A[user] + B[item]  -> (1, TB), all f32.
    pred = jnp.sum(elem_f32, axis=0, keepdims=True) + a_ref[...] + b_ref[...]

    # Regression MLP on concat([u, q, u*q]) without materializing the concat:
    # the first Linear is split along its input axis into three K=32 bf16 matmuls
    # accumulating in f32.
    h = (jnp.dot(w1u_ref[...], u, preferred_element_type=jnp.float32)
         + jnp.dot(w1q_ref[...], q, preferred_element_type=jnp.float32)
         + jnp.dot(w1e_ref[...], elem, preferred_element_type=jnp.float32)
         + b1_ref[...])                             # (H, TB) f32
    h = jnp.maximum(h, 0.0)                         # ReLU

    # Second Linear (H -> 1): VPU multiply + sublane reduce instead of an N=1 matmul.
    s = jnp.sum(h * w2_ref[...], axis=0, keepdims=True) + b2_ref[...]   # (1, TB)
    score = 5.0 * jax.nn.sigmoid(s)                 # clip predicted rating to [0, 5]

    # Single lane- and sublane-dense store of the whole (2, TB) output slab.
    out_ref[...] = jnp.concatenate([pred, score], axis=0)


def _choose_block_b(batch, requested):
    """Largest useful batch tile: multiple of 128, no bigger than the padded batch."""
    b128 = max(128, pl.cdiv(batch, 128) * 128)
    return min(requested, b128)


def _vmem_limit_bytes(block_b, D, H):
    """Scoped-VMEM request sized to the tile footprint (with headroom), clamped
    so it stays under v7x's 64 MiB physical VMEM on every generation."""
    streamed = block_b * (2 * D * 2        # u, q  (bf16)
                          + 2 * 4          # a, b  (f32)
                          + 2 * 4)         # out   (2 rows f32)
    weights = (3 * H * D) * 2 + (2 * H + 1) * 4
    interm = block_b * (H + 2 * D + 8) * 4  # h, elem temporaries, slack
    est = 2 * streamed + weights + interm   # x2: double-buffered pipeline
    return int(min(max(4 * est, 32 * 2 ** 20), 56 * 2 ** 20))


def multitask_forward(user_ids, item_ids, params, *, block_b=4096):
    """Returns (predictions, score), each of shape (batch,)."""
    U, Q, A, B = params["U"], params["Q"], params["A"], params["B"]
    W1, b1, W2, b2 = params["W1"], params["b1"], params["W2"], params["b2"]

    D = U.shape[1]
    H = W1.shape[0]
    assert W1.shape == (H, 3 * D)

    batch = user_ids.shape[0]
    block_b = _choose_block_b(batch, block_b)
    assert block_b % 128 == 0, "batch tile must be a multiple of the lane width"

    b_pad = pl.cdiv(batch, block_b) * block_b
    pad = b_pad - batch

    # Pad the *ids* (with a valid index) instead of the gathered matrices — avoids
    # materializing full-array pad copies of the (D, B) activations.
    uid = user_ids.astype(jnp.int32)
    iid = item_ids.astype(jnp.int32)
    if pad:
        uid = jnp.pad(uid, (0, pad))
        iid = jnp.pad(iid, (0, pad))

    # --- glue: embedding gathers, transpose so batch is the lane axis, bf16 stream ---
    u_t = jnp.take(U, uid, axis=0).T.astype(jnp.bfloat16)   # (D, b_pad)
    q_t = jnp.take(Q, iid, axis=0).T.astype(jnp.bfloat16)   # (D, b_pad)
    a_t = jnp.take(A, uid, axis=0).T                        # (1, b_pad) f32
    b_t = jnp.take(B, iid, axis=0).T                        # (1, b_pad) f32

    # --- layout plumbing for the MLP parameters (host/XLA side, negligible) ---
    w1u = W1[:, 0 * D:1 * D].astype(jnp.bfloat16)            # (H, D)
    w1q = W1[:, 1 * D:2 * D].astype(jnp.bfloat16)            # (H, D)
    w1e = W1[:, 2 * D:3 * D].astype(jnp.bfloat16)            # (H, D)
    b1_col = b1.reshape(H, 1).astype(jnp.float32)
    w2_col = W2.reshape(H, 1).astype(jnp.float32)
    b2_s = b2.reshape(1, 1).astype(jnp.float32)

    grid = (b_pad // block_b,)

    def batch_spec(rows):
        return pl.BlockSpec((rows, block_b), lambda i: (0, i))

    def rep_spec(shape):
        return pl.BlockSpec(shape, lambda i: (0, 0))

    out = pl.pallas_call(
        _multitask_kernel,
        out_shape=jax.ShapeDtypeStruct((2, b_pad), jnp.float32),
        grid=grid,
        in_specs=[batch_spec(D), batch_spec(D), batch_spec(1), batch_spec(1),
                  rep_spec((H, D)), rep_spec((H, D)), rep_spec((H, D)),
                  rep_spec((H, 1)), rep_spec((H, 1)), rep_spec((1, 1))],
        out_specs=pl.BlockSpec((2, block_b), lambda i: (0, i)),
        compiler_params=pltpu.CompilerParams(
            dimension_semantics=("parallel",),
            vmem_limit_bytes=_vmem_limit_bytes(block_b, D, H)),
    )(u_t, q_t, a_t, b_t, w1u, w1q, w1e, b1_col, w2_col, b2_s)

    predictions = out[0, :batch]
    score = out[1, :batch]
    return predictions, score


def multitask_reference(user_ids, item_ids, params):
    """Pure-JAX f32 reference matching the PyTorch forward pass."""
    U, Q, A, B = params["U"], params["Q"], params["A"], params["B"]
    W1, b1, W2, b2 = params["W1"], params["b1"], params["W2"], params["b2"]
    u = U[user_ids]
    q = Q[item_ids]
    e = u * q
    pred = jnp.sum(e, axis=1) + A[user_ids, 0] + B[item_ids, 0]
    reg = jnp.concatenate([u, q, e], axis=1)
    h = jnp.maximum(reg @ W1.T + b1, 0.0)
    s = jax.nn.sigmoid(h @ W2.T + b2)[:, 0]
    return pred, 5.0 * s


def init_params(key, num_users, num_items, embedding_dim=32, layer_sizes=(96, 64)):
    """Deterministic parameter init mirroring the PyTorch module's shapes.

    W1 is stored torch-style (out_features, in_features) = (64, 96) with its
    input columns ordered [u | q | u*q]; W2 is (1, 64).
    """
    k_u, k_q, k_w1, k_b1, k_w2, k_b2 = jax.random.split(key, 6)

    # ScaledEmbedding: normal(0, 1/embedding_dim)
    U = jax.random.normal(k_u, (num_users, embedding_dim), jnp.float32) / embedding_dim
    Q = jax.random.normal(k_q, (num_items, embedding_dim), jnp.float32) / embedding_dim
    # ZeroEmbedding biases
    A = jnp.zeros((num_users, 1), jnp.float32)
    B = jnp.zeros((num_items, 1), jnp.float32)

    in1, out1 = layer_sizes[0], layer_sizes[1]
    W1 = jax.random.normal(k_w1, (out1, in1), jnp.float32) * (1.0 / jnp.sqrt(in1))
    b1 = jax.random.normal(k_b1, (out1,), jnp.float32) * 0.01
    W2 = jax.random.normal(k_w2, (1, out1), jnp.float32) * (1.0 / jnp.sqrt(out1))
    b2 = jax.random.normal(k_b2, (1,), jnp.float32) * 0.01

    return dict(U=U, Q=Q, A=A, B=B, W1=W1, b1=b1, W2=W2, b2=b2)


if __name__ == "__main__":
    key = jax.random.PRNGKey(0)
    num_users, num_items = 16, 24
    embedding_dim = 32
    batch = 8

    k_params, k_uid, k_iid = jax.random.split(key, 3)
    params = init_params(k_params, num_users, num_items, embedding_dim)

    user_ids = jax.random.randint(k_uid, (batch,), 0, num_users, dtype=jnp.int32)
    item_ids = jax.random.randint(k_iid, (batch,), 0, num_items, dtype=jnp.int32)

    fwd = jax.jit(lambda uid, iid: multitask_forward(uid, iid, params))
    predictions, score = fwd(user_ids, item_ids)
    jax.block_until_ready((predictions, score))

    ref_pred, ref_score = multitask_reference(user_ids, item_ids, params)

    assert predictions.shape == (batch,) and score.shape == (batch,)
    assert bool(jnp.all(score >= 0.0)) and bool(jnp.all(score <= 5.0))
    # bf16 embedding streaming: slightly looser tolerances than the pure-f32 kernel.
    assert bool(jnp.allclose(predictions, ref_pred, rtol=2e-2, atol=5e-3))
    assert bool(jnp.allclose(score, ref_score, rtol=2e-2, atol=5e-3))
    print("KERNEL_OK")
</pallas_src>

<mosaic_0001>
module attributes {stable_mosaic.version = 11 : i64} {
  func.func @_multitask_kernel(%arg0: i32, %arg1: memref<32x128xbf16, #tpu.memory_space<vmem>>, %arg2: memref<32x128xbf16, #tpu.memory_space<vmem>>, %arg3: memref<1x128xf32, #tpu.memory_space<vmem>>, %arg4: memref<1x128xf32, #tpu.memory_space<vmem>>, %arg5: memref<64x32xbf16, #tpu.memory_space<vmem>>, %arg6: memref<64x32xbf16, #tpu.memory_space<vmem>>, %arg7: memref<64x32xbf16, #tpu.memory_space<vmem>>, %arg8: memref<64x1xf32, #tpu.memory_space<vmem>>, %arg9: memref<64x1xf32, #tpu.memory_space<vmem>>, %arg10: memref<1x1xf32, #tpu.memory_space<vmem>>, %arg11: memref<2x128xf32, #tpu.memory_space<vmem>>) attributes {dimension_semantics = [#tpu.dimension_semantics<parallel>], iteration_bounds = array<i64: 1>, scalar_prefetch = 0 : i64, scratch_operands = 0 : i64, tpu.core_type = #tpu.core_type<tc>, window_params = [{transform_indices = @transform_0, window_bounds = array<i64: 32, 128>}, {transform_indices = @transform_1, window_bounds = array<i64: 32, 128>}, {transform_indices = @transform_2, window_bounds = array<i64: 1, 128>}, {transform_indices = @transform_3, window_bounds = array<i64: 1, 128>}, {pipeline_mode = #tpu.pipeline_mode<synchronous>, transform_indices = @transform_4, window_bounds = array<i64: 64, 32>}, {pipeline_mode = #tpu.pipeline_mode<synchronous>, transform_indices = @transform_5, window_bounds = array<i64: 64, 32>}, {pipeline_mode = #tpu.pipeline_mode<synchronous>, transform_indices = @transform_6, window_bounds = array<i64: 64, 32>}, {pipeline_mode = #tpu.pipeline_mode<synchronous>, transform_indices = @transform_7, window_bounds = array<i64: 64, 1>}, {pipeline_mode = #tpu.pipeline_mode<synchronous>, transform_indices = @transform_8, window_bounds = array<i64: 64, 1>}, {pipeline_mode = #tpu.pipeline_mode<synchronous>, transform_indices = @transform_9, window_bounds = array<i64: 1, 1>}, {transform_indices = @transform_10, window_bounds = array<i64: 2, 128>}]} {
    %c0 = arith.constant 0 : index
    %c0_0 = arith.constant 0 : index
    %0 = vector.load %arg1[%c0, %c0_0] : memref<32x128xbf16, #tpu.memory_space<vmem>>, vector<32x128xbf16>
    %c0_1 = arith.constant 0 : index
    %c0_2 = arith.constant 0 : index
    %1 = vector.load %arg2[%c0_1, %c0_2] : memref<32x128xbf16, #tpu.memory_space<vmem>>, vector<32x128xbf16>
    %2 = arith.extf %0 : vector<32x128xbf16> to vector<32x128xf32>
    %3 = arith.extf %1 : vector<32x128xbf16> to vector<32x128xf32>
    %4 = arith.mulf %2, %3 : vector<32x128xf32>
    %5 = arith.truncf %4 : vector<32x128xf32> to vector<32x128xbf16>
    %cst = arith.constant dense<0.000000e+00> : vector<128xf32>
    %6 = vector.multi_reduction <add>, %4, %cst [0] : vector<32x128xf32> to vector<128xf32>
    %7 = vector.shape_cast %6 : vector<128xf32> to vector<1x128xf32>
    %c0_3 = arith.constant 0 : index
    %c0_4 = arith.constant 0 : index
    %8 = vector.load %arg3[%c0_3, %c0_4] : memref<1x128xf32, #tpu.memory_space<vmem>>, vector<1x128xf32>
    %9 = arith.addf %7, %8 : vector<1x128xf32>
    %c0_5 = arith.constant 0 : index
    %c0_6 = arith.constant 0 : index
    %10 = vector.load %arg4[%c0_5, %c0_6] : memref<1x128xf32, #tpu.memory_space<vmem>>, vector<1x128xf32>
    %11 = arith.addf %9, %10 : vector<1x128xf32>
    %c0_7 = arith.constant 0 : index
    %c0_8 = arith.constant 0 : index
    %12 = vector.load %arg5[%c0_7, %c0_8] : memref<64x32xbf16, #tpu.memory_space<vmem>>, vector<64x32xbf16>
    %cst_9 = arith.constant dense<0.000000e+00> : vector<64x128xf32>
    %13 = tpu.matmul %12, %0, %cst_9 {dimension_numbers = #tpu.dot_dimension_numbers<[1], [0], [0], [1], [0, 0, 1, 1], [], []>} : vector<64x32xbf16>, vector<32x128xbf16>, vector<64x128xf32> -> vector<64x128xf32>
    %c0_10 = arith.constant 0 : index
    %c0_11 = arith.constant 0 : index
    %14 = vector.load %arg6[%c0_10, %c0_11] : memref<64x32xbf16, #tpu.memory_space<vmem>>, vector<64x32xbf16>
    %cst_12 = arith.constant dense<0.000000e+00> : vector<64x128xf32>
    %15 = tpu.matmul %14, %1, %cst_12 {dimension_numbers = #tpu.dot_dimension_numbers<[1], [0], [0], [1], [0, 0, 1, 1], [], []>} : vector<64x32xbf16>, vector<32x128xbf16>, vector<64x128xf32> -> vector<64x128xf32>
    %16 = arith.addf %13, %15 : vector<64x128xf32>
    %c0_13 = arith.constant 0 : index
    %c0_14 = arith.constant 0 : index
    %17 = vector.load %arg7[%c0_13, %c0_14] : memref<64x32xbf16, #tpu.memory_space<vmem>>, vector<64x32xbf16>
    %cst_15 = arith.constant dense<0.000000e+00> : vector<64x128xf32>
    %18 = tpu.matmul %17, %5, %cst_15 {dimension_numbers = #tpu.dot_dimension_numbers<[1], [0], [0], [1], [0, 0, 1, 1], [], []>} : vector<64x32xbf16>, vector<32x128xbf16>, vector<64x128xf32> -> vector<64x128xf32>
    %19 = arith.addf %16, %18 : vector<64x128xf32>
    %c0_16 = arith.constant 0 : index
    %c0_17 = arith.constant 0 : index
    %20 = vector.load %arg8[%c0_16, %c0_17] : memref<64x1xf32, #tpu.memory_space<vmem>>, vector<64x1xf32>
    %21 = vector.broadcast %20 : vector<64x1xf32> to vector<64x128xf32>
    %22 = arith.addf %19, %21 : vector<64x128xf32>
    %cst_18 = arith.constant 0.000000e+00 : f32
    %23 = vector.broadcast %cst_18 : f32 to vector<64x128xf32>
    %24 = arith.maximumf %22, %23 : vector<64x128xf32>
    %c0_19 = arith.constant 0 : index
    %c0_20 = arith.constant 0 : index
    %25 = vector.load %arg9[%c0_19, %c0_20] : memref<64x1xf32, #tpu.memory_space<vmem>>, vector<64x1xf32>
    %26 = vector.broadcast %25 : vector<64x1xf32> to vector<64x128xf32>
    %27 = arith.mulf %24, %26 : vector<64x128xf32>
    %cst_21 = arith.constant dense<0.000000e+00> : vector<128xf32>
    %28 = vector.multi_reduction <add>, %27, %cst_21 [0] : vector<64x128xf32> to vector<128xf32>
    %29 = vector.shape_cast %28 : vector<128xf32> to vector<1x128xf32>
    %c0_22 = arith.constant 0 : index
    %c0_23 = arith.constant 0 : index
    %30 = vector.load %arg10[%c0_22, %c0_23] : memref<1x1xf32, #tpu.memory_space<vmem>>, vector<1x1xf32>
    %31 = vector.broadcast %30 : vector<1x1xf32> to vector<1x128xf32>
    %32 = arith.addf %29, %31 : vector<1x128xf32>
    %33 = arith.negf %32 : vector<1x128xf32>
    %34 = math.exp %33 : vector<1x128xf32>
    %cst_24 = arith.constant 1.000000e+00 : f32
    %35 = vector.broadcast %cst_24 : f32 to vector<1x128xf32>
    %36 = arith.addf %35, %34 : vector<1x128xf32>
    %37 = arith.divf %35, %36 : vector<1x128xf32>
    %cst_25 = arith.constant 5.000000e+00 : f32
    %38 = vector.broadcast %cst_25 : f32 to vector<1x128xf32>
    %39 = arith.mulf %38, %37 : vector<1x128xf32>
    %40 = tpu.concatenate %11, %39 in 0 : vector<1x128xf32>, vector<1x128xf32> -> vector<2x128xf32>
    %c0_26 = arith.constant 0 : index
    %c0_27 = arith.constant 0 : index
    %41 = vector.load %arg11[%c0_26, %c0_27] : memref<2x128xf32, #tpu.memory_space<vmem>>, vector<2x128xf32>
    tpu.vector_store %arg11[%c0_26, %c0_27], %40 {strides = array<i32>} : memref<2x128xf32, #tpu.memory_space<vmem>>, vector<2x128xf32>,
    return
  }
  func.func @transform_0(%arg0: i32) -> (i32, i32) {
    %c0_i32 = arith.constant 0 : i32
    %c0_i32_0 = arith.constant 0 : i32
    return %c0_i32, %arg0 : i32, i32
  }
  func.func @transform_1(%arg0: i32) -> (i32, i32) {
    %c0_i32 = arith.constant 0 : i32
    %c0_i32_0 = arith.constant 0 : i32
    return %c0_i32, %arg0 : i32, i32
  }
  func.func @transform_2(%arg0: i32) -> (i32, i32) {
    %c0_i32 = arith.constant 0 : i32
    %c0_i32_0 = arith.constant 0 : i32
    return %c0_i32, %arg0 : i32, i32
  }
  func.func @transform_3(%arg0: i32) -> (i32, i32) {
    %c0_i32 = arith.constant 0 : i32
    %c0_i32_0 = arith.constant 0 : i32
    return %c0_i32, %arg0 : i32, i32
  }
  func.func @transform_4(%arg0: i32) -> (i32, i32) {
    %c0_i32 = arith.constant 0 : i32
    %c0_i32_0 = arith.constant 0 : i32
    %c0_i32_1 = arith.constant 0 : i32
    return %c0_i32, %c0_i32_0 : i32, i32
  }
  func.func @transform_5(%arg0: i32) -> (i32, i32) {
    %c0_i32 = arith.constant 0 : i32
    %c0_i32_0 = arith.constant 0 : i32
    %c0_i32_1 = arith.constant 0 : i32
    return %c0_i32, %c0_i32_0 : i32, i32
  }
  func.func @transform_6(%arg0: i32) -> (i32, i32) {
    %c0_i32 = arith.constant 0 : i32
    %c0_i32_0 = arith.constant 0 : i32
    %c0_i32_1 = arith.constant 0 : i32
    return %c0_i32, %c0_i32_0 : i32, i32
  }
  func.func @transform_7(%arg0: i32) -> (i32, i32) {
    %c0_i32 = arith.constant 0 : i32
    %c0_i32_0 = arith.constant 0 : i32
    %c0_i32_1 = arith.constant 0 : i32
    return %c0_i32, %c0_i32_0 : i32, i32
  }
  func.func @transform_8(%arg0: i32) -> (i32, i32) {
    %c0_i32 = arith.constant 0 : i32
    %c0_i32_0 = arith.constant 0 : i32
    %c0_i32_1 = arith.constant 0 : i32
    return %c0_i32, %c0_i32_0 : i32, i32
  }
  func.func @transform_9(%arg0: i32) -> (i32, i32) {
    %c0_i32 = arith.constant 0 : i32
    %c0_i32_0 = arith.constant 0 : i32
    %c0_i32_1 = arith.constant 0 : i32
    return %c0_i32, %c0_i32_0 : i32, i32
  }
  func.func @transform_10(%arg0: i32) -> (i32, i32) {
    %c0_i32 = arith.constant 0 : i32
    %c0_i32_0 = arith.constant 0 : i32
    return %c0_i32, %arg0 : i32, i32
  }
}

</mosaic_0001>

<llo_original>
// kernel: _lambda_.1
$region0: #{_lambda_.1}
  #allocation0 [shape = 'u32[]', space=smem, size = 0x4, offset = 0x4, fixed_abs, tag = 'smem constant byte address 0x4 - core index']
  #allocation1 [shape = 'u32[144,128]{1,0:T(1,128)}', space=vmem, size = 0x12000, scoped, tag = 'internal scratch']
  #allocation2 [shape = 'f32[1,1]{1,0:T(1,128)S(1)}', space=vmem, size = 0x200, scoped, tag = 'scoped memory for _lambda_.1']
  %s0 = inlined_call_operand.vmem [shape: bf16[32,128], index: 0, kind: input, shape index: {}]
  %s1 = inlined_call_operand.vmem [shape: bf16[32,128], index: 1, kind: input, shape index: {}]
  %s2 = inlined_call_operand.vmem [shape: f32[1,128], index: 2, kind: input, shape index: {}]
  %s3 = inlined_call_operand.vmem [shape: f32[1,128], index: 3, kind: input, shape index: {}]
  %s4 = inlined_call_operand.vmem [shape: bf16[64,32], index: 4, kind: input, shape index: {}]
  %s5 = inlined_call_operand.vmem [shape: bf16[64,32], index: 5, kind: input, shape index: {}]
  %s6 = inlined_call_operand.vmem [shape: bf16[64,32], index: 6, kind: input, shape index: {}]
  %s7 = inlined_call_operand.vmem [shape: f32[64,1], index: 7, kind: input, shape index: {}]
  %s8 = inlined_call_operand.vmem [shape: f32[64,1], index: 8, kind: input, shape index: {}]
  %s9 = inlined_call_operand.<no memory space> [shape: f32[1,1], index: 9, kind: input, shape index: {}]
  %s10 = inlined_call_operand.vmem [shape: f32[2,128], index: 10, kind: output, shape index: {}]
  %s11 = sld [smem:[#allocation0]]
  $region50: #{_lambda_.1} parent=0
    _
  %s13 = ssub.s32 1, %s11
  %s14 = scalar_select 0, %s13, %s11
  %v15 = vstv %s9
  %16 = vst [vmem:[#allocation2] sm:$0x1] %v15
  // Predicated region
  $region2: #{_lambda_.1} parent=0 // pred_check
    _
  $region3: #{_lambda_.1} parent=0 // pred_check_branch
    %18 = sbr.rel (0) target = $region5
  $region4: #{_lambda_.1} parent=0 // pred_region
    _
  $region5: #{_lambda_.1} parent=0 // pred_fallthru
    _
  // Predicated region
  $region6: #{_lambda_.1} parent=0 // pred_check
    _
  $region7: #{_lambda_.1} parent=0 // pred_check_branch
    %20 = sbr.rel (0) target = $region9
  $region8: #{_lambda_.1} parent=0 // pred_region
    _
  $region9: #{_lambda_.1} parent=0 // pred_fallthru
    _
  // Predicated region
  $region10: #{_lambda_.1} parent=0 // pred_check
    _
  $region11: #{_lambda_.1} parent=0 // pred_check_branch
    %22 = sbr.rel (0) target = $region13
  $region12: #{_lambda_.1} parent=0 // pred_region
    _
  $region13: #{_lambda_.1} parent=0 // pred_fallthru
    _
  // Predicated region
  $region14: #{_lambda_.1} parent=0 // pred_check
    _
  $region15: #{_lambda_.1} parent=0 // pred_check_branch
    %24 = sbr.rel (0) target = $region17
  $region16: #{_lambda_.1} parent=0 // pred_region
    _
  $region17: #{_lambda_.1} parent=0 // pred_fallthru
    _
  // Predicated region
  $region18: #{_lambda_.1} parent=0 // pred_check
    _
  $region19: #{_lambda_.1} parent=0 // pred_check_branch
    %26 = sbr.rel (0) target = $region21
  $region20: #{_lambda_.1} parent=0 // pred_region
    _
  $region21: #{_lambda_.1} parent=0 // pred_fallthru
    _
  // Predicated region
  $region22: #{_lambda_.1} parent=0 // pred_check
    _
  $region23: #{_lambda_.1} parent=0 // pred_check_branch
    %28 = sbr.rel (0) target = $region25
  $region24: #{_lambda_.1} parent=0 // pred_region
    _
  $region25: #{_lambda_.1} parent=0 // pred_fallthru
    _
  // Predicated region
  $region26: #{_lambda_.1} parent=0 // pred_check
    _
  $region27: #{_lambda_.1} parent=0 // pred_check_branch
    %30 = sbr.rel (0) target = $region29
  $region28: #{_lambda_.1} parent=0 // pred_region
    _
  $region29: #{_lambda_.1} parent=0 // pred_fallthru
    _
  // Predicated region
  $region30: #{_lambda_.1} parent=0 // pred_check
    _
  $region31: #{_lambda_.1} parent=0 // pred_check_branch
    %32 = sbr.rel (0) target = $region33
  $region32: #{_lambda_.1} parent=0 // pred_region
    _
  $region33: #{_lambda_.1} parent=0 // pred_fallthru
    _
  // Predicated region
  $region34: #{_lambda_.1} parent=0 // pred_check
    _
  $region35: #{_lambda_.1} parent=0 // pred_check_branch
    %34 = sbr.rel (0) target = $region37
  $region36: #{_lambda_.1} parent=0 // pred_region
    _
  $region37: #{_lambda_.1} parent=0 // pred_fallthru
    _
  // Predicated region
  $region38: #{_lambda_.1} parent=0 // pred_check
    _
  $region39: #{_lambda_.1} parent=0 // pred_check_branch
    %36 = sbr.rel (0) target = $region41
  $region40: #{_lambda_.1} parent=0 // pred_region
    _
  $region41: #{_lambda_.1} parent=0 // pred_fallthru
    _
  %v38 = vld [vmem:[%s0] sm:$0xf]
  %v39 = vld [vmem:[%s0 + $0x4] sm:$0xf]
  %v40 = vld [vmem:[%s0 + $0x8] sm:$0xf]
  %v41 = vld [vmem:[%s0 + $0xc] sm:$0xf]
  %v42 = vld [vmem:[%s1] sm:$0xf]
  %v43 = vld [vmem:[%s1 + $0x4] sm:$0xf]
  %v44 = vld [vmem:[%s1 + $0x8] sm:$0xf]
  %v45 = vld [vmem:[%s1 + $0xc] sm:$0xf]
  %v46 = vunpack.c.l.bf16 %v38
  %v47 = vunpack.c.l.bf16 %v39
  %v48 = vunpack.c.l.bf16 %v40
  %v49 = vunpack.c.l.bf16 %v41
  %v50 = vunpack.c.l.bf16 %v42
  %v51 = vunpack.c.l.bf16 %v43
  %v52 = vunpack.c.l.bf16 %v44
  %v53 = vunpack.c.l.bf16 %v45
  %v54 = vmul.f32 %v46, %v50
  %v55 = vmul.f32 %v47, %v51
  %v56 = vmul.f32 %v48, %v52
  %v57 = vmul.f32 %v49, %v53
  %v58 = vpack.c.bf16 %v55, %v54
  %v59 = vpack.c.bf16 %v57, %v56
  %v60 = vadd.f32 %v54, %v55
  %v61 = vadd.f32 %v60, %v56
  %v62 = vadd.f32 %v61, %v57
  %v63 = vrot.slane %v62, 4
  %v64 = vadd.f32 %v62, %v63
  %v65 = vrot.slane %v64, 2
  %v66 = vadd.f32 %v64, %v65
  %v67 = vrot.slane %v66, 1
  %v68 = vadd.f32 %v66, %v67
  %v69 = vld [vmem:[%s2] sm:$0x1]
  %v70 = vadd.f32 %v68, %v69
  %v71 = vld [vmem:[%s3] sm:$0x1]
  %v72 = vadd.f32 %v70, %v71
  %v73 = vld [vmem:[%s4] sm:$0xf]
  %v74 = vld [vmem:[%s4 + $0x4] sm:$0xf]
  %v75 = vld [vmem:[%s4 + $0x8] sm:$0xf]
  %v76 = vld [vmem:[%s4 + $0xc] sm:$0xf]
  %v77 = vld [vmem:[%s4 + $0x10] sm:$0xf]
  %v78 = vld [vmem:[%s4 + $0x14] sm:$0xf]
  %v79 = vld [vmem:[%s4 + $0x18] sm:$0xf]
  %v80 = vld [vmem:[%s4 + $0x1c] sm:$0xf]
  %v81 = vld [vmem:[%s5] sm:$0xf]
  %v82 = vld [vmem:[%s5 + $0x4] sm:$0xf]
  %v83 = vld [vmem:[%s5 + $0x8] sm:$0xf]
  %v84 = vld [vmem:[%s5 + $0xc] sm:$0xf]
  %v85 = vld [vmem:[%s5 + $0x10] sm:$0xf]
  %v86 = vld [vmem:[%s5 + $0x14] sm:$0xf]
  %v87 = vld [vmem:[%s5 + $0x18] sm:$0xf]
  %v88 = vld [vmem:[%s5 + $0x1c] sm:$0xf]
  %v97 = vunpack.c.l.b16 %v81
  %v98 = vunpack.c.l.b16 %v82
  %v99 = vunpack.c.l.b16 %v83
  %v100 = vunpack.c.l.b16 %v84
  %v101 = vunpack.c.l.b16 %v85
  %v102 = vunpack.c.l.b16 %v86
  %v103 = vunpack.c.l.b16 %v87
  %v104 = vunpack.c.l.b16 %v88
  %v105 = vpack.c.b16 %v98, %v97
  %v106 = vpack.c.b16 %v100, %v99
  %v107 = vpack.c.b16 %v102, %v101
  %v108 = vpack.c.b16 %v104, %v103
  %v113 = vunpack.c.l.b16 %v42
  %v114 = vunpack.c.l.b16 %v43
  %v115 = vunpack.c.l.b16 %v44
  %v116 = vunpack.c.l.b16 %v45
  %v117 = vpack.c.b16 %v114, %v113
  %v118 = vpack.c.b16 %v116, %v115
  %vm121 = vcmask 261120
  %v123 = vsel %vm121, %v105, 0
  %v126 = vsel %vm121, %v106, 0
  %v129 = vsel %vm121, %v107, 0
  %v132 = vsel %vm121, %v108, 0
  %134 = vmatprep.subr.bf16.mxu0 0
  %135 = vmatpush1.bf16.msra.mxu0 0
  %136 = vmatprep.subr.bf16.mxu0 0
  %137 = vmatpush1.bf16.msra.mxu0 0
  %138 = vmatprep.subr.bf16.mxu0 0
  %139 = vmatpush1.bf16.msra.mxu0 0
  %140 = vmatprep.subr.bf16.mxu0 0
  %141 = vmatpush1.bf16.msra.mxu0 0
  %142 = vmatprep.subr.bf16.mxu0 0
  %143 = vmatpush1.bf16.msra.mxu0 0
  %144 = vmatprep.subr.bf16.mxu0 0
  %145 = vmatpush1.bf16.msra.mxu0 0
  %146 = vmatprep.subr.bf16.mxu0 0
  %147 = vmatpush1.bf16.msra.mxu0 %v118
  %148 = vmatprep.subr.bf16.mxu0 0
  %149 = vmatpush1.bf16.msra.mxu0 %v117
  %150 = vmatprep.subr.bf16.mxu0 0
  %151 = vmatpush2.bf16.msra.mxu0 0
  %152 = vmatprep.subr.bf16.mxu0 0
  %153 = vmatpush2.bf16.msra.mxu0 0
  %154 = vmatprep.subr.bf16.mxu0 0
  %155 = vmatpush2.bf16.msra.mxu0 0
  %156 = vmatprep.subr.bf16.mxu0 0
  %157 = vmatpush2.bf16.msra.mxu0 0
  %158 = vmatprep.subr.bf16.mxu0 0
  %159 = vmatpush2.bf16.msra.mxu0 0
  %160 = vmatprep.subr.bf16.mxu0 0
  %161 = vmatpush2.bf16.msra.mxu0 0
  %162 = vmatprep.subr.bf16.mxu0 0
  %163 = vmatpush2.bf16.msra.mxu0 0
  %164 = vmatprep.subr.bf16.mxu0 0
  %165 = vmatpush2.bf16.msra.mxu0 0
  %166 = vmatprep.mubr.bf16.mxu0 0
  %167 = vmatmul.mubr.bf16.gmra.mxu0 %v123
  %v168 = vpop.f32.mrf.mxu0
  %v169 = vadd.f32 0.0, %v168
  %v170 = vpop.f32.mrf.mxu0
  %v171 = vpop.f32.mrf.mxu0
  %v172 = vadd.f32 0.0, %v171
  %v173 = vpop.f32.mrf.mxu0
  %174 = vmatprep.mubr.bf16.mxu0 0
  %175 = vmatmul.mubr.bf16.gmra.mxu0 %v126
  %v176 = vpop.f32.mrf.mxu0
  %v177 = vadd.f32 0.0, %v176
  %v178 = vpop.f32.mrf.mxu0
  %v179 = vpop.f32.mrf.mxu0
  %v180 = vadd.f32 0.0, %v179
  %v181 = vpop.f32.mrf.mxu0
  %182 = vmatprep.mubr.bf16.mxu0 0
  %183 = vmatmul.mubr.bf16.gmra.mxu0 %v129
  %v184 = vpop.f32.mrf.mxu0
  %v185 = vadd.f32 0.0, %v184
  %v186 = vpop.f32.mrf.mxu0
  %v187 = vpop.f32.mrf.mxu0
  %v188 = vadd.f32 0.0, %v187
  %v189 = vpop.f32.mrf.mxu0
  %190 = vmatprep.mubr.bf16.mxu0 0
  %191 = vmatmul.mubr.bf16.gmra.mxu0 %v132
  %v192 = vpop.f32.mrf.mxu0
  %v193 = vadd.f32 0.0, %v192
  %v194 = vpop.f32.mrf.mxu0
  %v195 = vpop.f32.mrf.mxu0
  %v196 = vadd.f32 0.0, %v195
  %v197 = vpop.f32.mrf.mxu0
  %198 = vdwg.mxu0
  %v207 = vunpack.c.l.b16 %v73
  %v208 = vunpack.c.l.b16 %v74
  %v209 = vunpack.c.l.b16 %v75
  %v210 = vunpack.c.l.b16 %v76
  %v211 = vunpack.c.l.b16 %v77
  %v212 = vunpack.c.l.b16 %v78
  %v213 = vunpack.c.l.b16 %v79
  %v214 = vunpack.c.l.b16 %v80
  %v215 = vpack.c.b16 %v208, %v207
  %v216 = vpack.c.b16 %v210, %v209
  %v217 = vpack.c.b16 %v212, %v211
  %v218 = vpack.c.b16 %v214, %v213
  %v223 = vunpack.c.l.b16 %v38
  %v224 = vunpack.c.l.b16 %v39
  %v225 = vunpack.c.l.b16 %v40
  %v226 = vunpack.c.l.b16 %v41
  %v227 = vpack.c.b16 %v224, %v223
  %v228 = vpack.c.b16 %v226, %v225
  %v232 = vsel %vm121, %v215, 0
  %v235 = vsel %vm121, %v216, 0
  %v238 = vsel %vm121, %v217, 0
  %v241 = vsel %vm121, %v218, 0
  %243 = vmatprep.subr.bf16.mxu0 0
  %244 = vmatpush1.bf16.msra.mxu0 0
  %245 = vmatprep.subr.bf16.mxu0 0
  %246 = vmatpush1.bf16.msra.mxu0 0
  %247 = vmatprep.subr.bf16.mxu0 0
  %248 = vmatpush1.bf16.msra.mxu0 0
  %249 = vmatprep.subr.bf16.mxu0 0
  %250 = vmatpush1.bf16.msra.mxu0 0
  %251 = vmatprep.subr.bf16.mxu0 0
  %252 = vmatpush1.bf16.msra.mxu0 0
  %253 = vmatprep.subr.bf16.mxu0 0
  %254 = vmatpush1.bf16.msra.mxu0 0
  %255 = vmatprep.subr.bf16.mxu0 0
  %256 = vmatpush1.bf16.msra.mxu0 %v228
  %257 = vmatprep.subr.bf16.mxu0 0
  %258 = vmatpush1.bf16.msra.mxu0 %v227
  %259 = vmatprep.subr.bf16.mxu0 0
  %260 = vmatpush2.bf16.msra.mxu0 0
  %261 = vmatprep.subr.bf16.mxu0 0
  %262 = vmatpush2.bf16.msra.mxu0 0
  %263 = vmatprep.subr.bf16.mxu0 0
  %264 = vmatpush2.bf16.msra.mxu0 0
  %265 = vmatprep.subr.bf16.mxu0 0
  %266 = vmatpush2.bf16.msra.mxu0 0
  %267 = vmatprep.subr.bf16.mxu0 0
  %268 = vmatpush2.bf16.msra.mxu0 0
  %269 = vmatprep.subr.bf16.mxu0 0
  %270 = vmatpush2.bf16.msra.mxu0 0
  %271 = vmatprep.subr.bf16.mxu0 0
  %272 = vmatpush2.bf16.msra.mxu0 0
  %273 = vmatprep.subr.bf16.mxu0 0
  %274 = vmatpush2.bf16.msra.mxu0 0
  %275 = vmatprep.mubr.bf16.mxu0 0
  %276 = vmatmul.mubr.bf16.gmra.mxu0 %v232
  %v277 = vpop.f32.mrf.mxu0
  %v278 = vadd.f32 %v169, %v277
  %v279 = vpop.f32.mrf.mxu0
  %v280 = vpop.f32.mrf.mxu0
  %v281 = vadd.f32 %v172, %v280
  %v282 = vpop.f32.mrf.mxu0
  %283 = vmatprep.mubr.bf16.mxu0 0
  %284 = vmatmul.mubr.bf16.gmra.mxu0 %v235
  %v285 = vpop.f32.mrf.mxu0
  %v286 = vadd.f32 %v177, %v285
  %v287 = vpop.f32.mrf.mxu0
  %v288 = vpop.f32.mrf.mxu0
  %v289 = vadd.f32 %v180, %v288
  %v290 = vpop.f32.mrf.mxu0
  %291 = vmatprep.mubr.bf16.mxu0 0
  %292 = vmatmul.mubr.bf16.gmra.mxu0 %v238
  %v293 = vpop.f32.mrf.mxu0
  %v294 = vadd.f32 %v185, %v293
  %v295 = vpop.f32.mrf.mxu0
  %v296 = vpop.f32.mrf.mxu0
  %v297 = vadd.f32 %v188, %v296
  %v298 = vpop.f32.mrf.mxu0
  %299 = vmatprep.mubr.bf16.mxu0 0
  %300 = vmatmul.mubr.bf16.gmra.mxu0 %v241
  %v301 = vpop.f32.mrf.mxu0
  %v302 = vadd.f32 %v193, %v301
  %v303 = vpop.f32.mrf.mxu0
  %v304 = vpop.f32.mrf.mxu0
  %v305 = vadd.f32 %v196, %v304
  %v306 = vpop.f32.mrf.mxu0
  %307 = vdwg.mxu0
  %v308 = vld [vmem:[%s6] sm:$0xf]
  %v309 = vld [vmem:[%s6 + $0x4] sm:$0xf]
  %v310 = vld [vmem:[%s6 + $0x8] sm:$0xf]
  %v311 = vld [vmem:[%s6 + $0xc] sm:$0xf]
  %v312 = vld [vmem:[%s6 + $0x10] sm:$0xf]
  %v313 = vld [vmem:[%s6 + $0x14] sm:$0xf]
  %v314 = vld [vmem:[%s6 + $0x18] sm:$0xf]
  %v315 = vld [vmem:[%s6 + $0x1c] sm:$0xf]
  %v324 = vunpack.c.l.b16 %v308
  %v325 = vunpack.c.l.b16 %v309
  %v326 = vunpack.c.l.b16 %v310
  %v327 = vunpack.c.l.b16 %v311
  %v328 = vunpack.c.l.b16 %v312
  %v329 = vunpack.c.l.b16 %v313
  %v330 = vunpack.c.l.b16 %v314
  %v331 = vunpack.c.l.b16 %v315
  %v332 = vpack.c.b16 %v325, %v324
  %v333 = vpack.c.b16 %v327, %v326
  %v334 = vpack.c.b16 %v329, %v328
  %v335 = vpack.c.b16 %v331, %v330
  %v337 = vsel %vm121, %v332, 0
  %v340 = vsel %vm121, %v333, 0
  %v343 = vsel %vm121, %v334, 0
  %v346 = vsel %vm121, %v335, 0
  %348 = vmatprep.subr.bf16.mxu0 0
  %349 = vmatpush1.bf16.msra.mxu0 0
  %350 = vmatprep.subr.bf16.mxu0 0
  %351 = vmatpush1.bf16.msra.mxu0 0
  %352 = vmatprep.subr.bf16.mxu0 0
  %353 = vmatpush1.bf16.msra.mxu0 0
  %354 = vmatprep.subr.bf16.mxu0 0
  %355 = vmatpush1.bf16.msra.mxu0 0
  %356 = vmatprep.subr.bf16.mxu0 0
  %357 = vmatpush1.bf16.msra.mxu0 0
  %358 = vmatprep.subr.bf16.mxu0 0
  %359 = vmatpush1.bf16.msra.mxu0 0
  %360 = vmatprep.subr.bf16.mxu0 0
  %361 = vmatpush1.bf16.msra.mxu0 %v59
  %362 = vmatprep.subr.bf16.mxu0 0
  %363 = vmatpush1.bf16.msra.mxu0 %v58
  %364 = vmatprep.subr.bf16.mxu0 0
  %365 = vmatpush2.bf16.msra.mxu0 0
  %366 = vmatprep.subr.bf16.mxu0 0
  %367 = vmatpush2.bf16.msra.mxu0 0
  %368 = vmatprep.subr.bf16.mxu0 0
  %369 = vmatpush2.bf16.msra.mxu0 0
  %370 = vmatprep.subr.bf16.mxu0 0
  %371 = vmatpush2.bf16.msra.mxu0 0
  %372 = vmatprep.subr.bf16.mxu0 0
  %373 = vmatpush2.bf16.msra.mxu0 0
  %374 = vmatprep.subr.bf16.mxu0 0
  %375 = vmatpush2.bf16.msra.mxu0 0
  %376 = vmatprep.subr.bf16.mxu0 0
  %377 = vmatpush2.bf16.msra.mxu0 0
  %378 = vmatprep.subr.bf16.mxu0 0
  %379 = vmatpush2.bf16.msra.mxu0 0
  %380 = vmatprep.mubr.bf16.mxu0 0
  %381 = vmatmul.mubr.bf16.gmra.mxu0 %v337
  %v382 = vpop.f32.mrf.mxu0
  %v383 = vadd.f32 0.0, %v382
  %v384 = vpop.f32.mrf.mxu0
  %v385 = vpop.f32.mrf.mxu0
  %v386 = vadd.f32 0.0, %v385
  %v387 = vpop.f32.mrf.mxu0
  %388 = vmatprep.mubr.bf16.mxu0 0
  %389 = vmatmul.mubr.bf16.gmra.mxu0 %v340
  %v390 = vpop.f32.mrf.mxu0
  %v391 = vadd.f32 0.0, %v390
  %v392 = vpop.f32.mrf.mxu0
  %v393 = vpop.f32.mrf.mxu0
  %v394 = vadd.f32 0.0, %v393
  %v395 = vpop.f32.mrf.mxu0
  %396 = vmatprep.mubr.bf16.mxu0 0
  %397 = vmatmul.mubr.bf16.gmra.mxu0 %v343
  %v398 = vpop.f32.mrf.mxu0
  %v399 = vadd.f32 0.0, %v398
  %v400 = vpop.f32.mrf.mxu0
  %v401 = vpop.f32.mrf.mxu0
  %v402 = vadd.f32 0.0, %v401
  %v403 = vpop.f32.mrf.mxu0
  %404 = vmatprep.mubr.bf16.mxu0 0
  %405 = vmatmul.mubr.bf16.gmra.mxu0 %v346
  %v406 = vpop.f32.mrf.mxu0
  %v407 = vadd.f32 0.0, %v406
  %v408 = vpop.f32.mrf.mxu0
  %v409 = vpop.f32.mrf.mxu0
  %v410 = vadd.f32 0.0, %v409
  %v411 = vpop.f32.mrf.mxu0
  %412 = vdwg.mxu0
  %v413 = vadd.f32 %v278, %v383
  %v414 = vadd.f32 %v281, %v386
  %v415 = vadd.f32 %v286, %v391
  %v416 = vadd.f32 %v289, %v394
  %v417 = vadd.f32 %v294, %v399
  %v418 = vadd.f32 %v297, %v402
  %v419 = vadd.f32 %v302, %v407
  %v420 = vadd.f32 %v305, %v410
  %v421 = vld [vmem:[%s7] sm:$0xff]
  %v422 = vld [vmem:[%s7 + $0x8] sm:$0xff]
  %v423 = vld [vmem:[%s7 + $0x10] sm:$0xff]
  %v424 = vld [vmem:[%s7 + $0x18] sm:$0xff]
  %v425 = vld [vmem:[%s7 + $0x20] sm:$0xff]
  %v426 = vld [vmem:[%s7 + $0x28] sm:$0xff]
  %v427 = vld [vmem:[%s7 + $0x30] sm:$0xff]
  %v428 = vld [vmem:[%s7 + $0x38] sm:$0xff]
  %430 = vset.pattern.permute.xlu0 0
  %431 = vperm.xlu0 %430, %v421
  %v432 = vpop.permute.xlu0 %431
  %435 = vset.pattern.permute.xlu0 0
  %436 = vperm.xlu0 %435, %v422
  %v437 = vpop.permute.xlu0 %436
  %440 = vset.pattern.permute.xlu0 0
  %441 = vperm.xlu0 %440, %v423
  %v442 = vpop.permute.xlu0 %441
  %445 = vset.pattern.permute.xlu0 0
  %446 = vperm.xlu0 %445, %v424
  %v447 = vpop.permute.xlu0 %446
  %450 = vset.pattern.permute.xlu0 0
  %451 = vperm.xlu0 %450, %v425
  %v452 = vpop.permute.xlu0 %451
  %455 = vset.pattern.permute.xlu0 0
  %456 = vperm.xlu0 %455, %v426
  %v457 = vpop.permute.xlu0 %456
  %460 = vset.pattern.permute.xlu0 0
  %461 = vperm.xlu0 %460, %v427
  %v462 = vpop.permute.xlu0 %461
  %465 = vset.pattern.permute.xlu0 0
  %466 = vperm.xlu0 %465, %v428
  %v467 = vpop.permute.xlu0 %466
  %v469 = vadd.f32 %v413, %v432
  %v470 = vadd.f32 %v414, %v437
  %v471 = vadd.f32 %v415, %v442
  %v472 = vadd.f32 %v416, %v447
  %v473 = vadd.f32 %v417, %v452
  %v474 = vadd.f32 %v418, %v457
  %v475 = vadd.f32 %v419, %v462
  %v476 = vadd.f32 %v420, %v467
  %v477 = vmax.f32 %v469, 0.0
  %v478 = vmax.f32 %v470, 0.0
  %v479 = vmax.f32 %v471, 0.0
  %v480 = vmax.f32 %v472, 0.0
  %v481 = vmax.f32 %v473, 0.0
  %v482 = vmax.f32 %v474, 0.0
  %v483 = vmax.f32 %v475, 0.0
  %v484 = vmax.f32 %v476, 0.0
  %v485 = vld [vmem:[%s8] sm:$0xff]
  %v486 = vld [vmem:[%s8 + $0x8] sm:$0xff]
  %v487 = vld [vmem:[%s8 + $0x10] sm:$0xff]
  %v488 = vld [vmem:[%s8 + $0x18] sm:$0xff]
  %v489 = vld [vmem:[%s8 + $0x20] sm:$0xff]
  %v490 = vld [vmem:[%s8 + $0x28] sm:$0xff]
  %v491 = vld [vmem:[%s8 + $0x30] sm:$0xff]
  %v492 = vld [vmem:[%s8 + $0x38] sm:$0xff]
  %494 = vset.pattern.permute.xlu0 0
  %495 = vperm.xlu0 %494, %v485
  %v496 = vpop.permute.xlu0 %495
  %499 = vset.pattern.permute.xlu0 0
  %500 = vperm.xlu0 %499, %v486
  %v501 = vpop.permute.xlu0 %500
  %504 = vset.pattern.permute.xlu0 0
  %505 = vperm.xlu0 %504, %v487
  %v506 = vpop.permute.xlu0 %505
  %509 = vset.pattern.permute.xlu0 0
  %510 = vperm.xlu0 %509, %v488
  %v511 = vpop.permute.xlu0 %510
  %514 = vset.pattern.permute.xlu0 0
  %515 = vperm.xlu0 %514, %v489
  %v516 = vpop.permute.xlu0 %515
  %519 = vset.pattern.permute.xlu0 0
  %520 = vperm.xlu0 %519, %v490
  %v521 = vpop.permute.xlu0 %520
  %524 = vset.pattern.permute.xlu0 0
  %525 = vperm.xlu0 %524, %v491
  %v526 = vpop.permute.xlu0 %525
  %529 = vset.pattern.permute.xlu0 0
  %530 = vperm.xlu0 %529, %v492
  %v531 = vpop.permute.xlu0 %530
  %v533 = vmul.f32 %v477, %v496
  %v534 = vmul.f32 %v478, %v501
  %v535 = vmul.f32 %v479, %v506
  %v536 = vmul.f32 %v480, %v511
  %v537 = vmul.f32 %v481, %v516
  %v538 = vmul.f32 %v482, %v521
  %v539 = vmul.f32 %v483, %v526
  %v540 = vmul.f32 %v484, %v531
  %v541 = vadd.f32 %v533, %v534
  %v542 = vadd.f32 %v541, %v535
  %v543 = vadd.f32 %v542, %v536
  %v544 = vadd.f32 %v543, %v537
  %v545 = vadd.f32 %v544, %v538
  %v546 = vadd.f32 %v545, %v539
  %v547 = vadd.f32 %v546, %v540
  %v548 = vrot.slane %v547, 4
  %v549 = vadd.f32 %v547, %v548
  %v550 = vrot.slane %v549, 2
  %v551 = vadd.f32 %v549, %v550
  %v552 = vrot.slane %v551, 1
  %v553 = vadd.f32 %v551, %v552
  %v554 = vld [vmem:[#allocation2] sm:$0x1]
  %556 = vset.pattern.permute.xlu0 0
  %557 = vperm.xlu0 %556, %v554
  %v558 = vpop.permute.xlu0 %557
  %v560 = vlaneseq
  %v561 = vshrl.u32 %v560, 7
  %v562 = vsub.s32 0, %v561
  %v563 = vrot.slane %v558, %v562
  %v564 = vadd.f32 %v553, %v563
  %v565 = vxor.u32 %v564, 2147483648
  %v566 = vmul.f32 %v565, 1.442695
  %v567 = vpow.pop %v566
  %v568 = vadd.f32 %v567, 1.0
  %v569 = vrcp.pop %v568
  %v570 = vmul.f32 1.0, %v569
  %v571 = vmul.f32 %v570, 5.0
  %vm572 = vcmask 1040384
  %v573 = vsel %vm572, %v72, %v571
  %574 = vst [vmem:[%s10] sm:$0x3] %v573
  // Predicated region
  $region42: #{_lambda_.1} parent=0 // pred_check
    _
  $region43: #{_lambda_.1} parent=0 // pred_check_branch
    %576 = sbr.rel (0) target = $region45
  $region44: #{_lambda_.1} parent=0 // pred_region
    _
  $region45: #{_lambda_.1} parent=0 // pred_fallthru
    _
  // Predicated region
  $region46: #{_lambda_.1} parent=0 // pred_check
    _
  $region47: #{_lambda_.1} parent=0 // pred_check_branch
    %578 = sbr.rel (0) target = $region49
  $region48: #{_lambda_.1} parent=0 // pred_region
    _
  $region49: #{_lambda_.1} parent=0 // pred_fallthru
    _

</llo_original>
